<compile_context>
chip_gen: v6e
topology: v6e:2x2x1
jax: 0.10.0
libtpu: 0.0.40
codegen_flags: <defaults>
</compile_context>

<pallas_src>
import jax
import jax.numpy as jnp
from jax.experimental import pallas as pl
from jax.experimental.pallas import tpu as pltpu


def _linear_kernel(x_ref, w_ref, b_ref, o_ref):
    # x_ref: (TM, D) compute_dtype, w_ref: (D, C) compute_dtype,
    # b_ref: (1, C) f32, o_ref: (TM, C) out dtype.  f32 accumulation on MXU.
    acc = jnp.dot(x_ref[...], w_ref[...], preferred_element_type=jnp.float32)
    o_ref[...] = (acc + b_ref[...]).astype(o_ref.dtype)


def _round_up(x, m):
    return ((x + m - 1) // m) * m


def ctc_forward(batch, weight, bias, *, tile_m=1024, compute_dtype=jnp.bfloat16):
    """Equivalent of CTC.forward: Linear(input_size, num_classes) over batch.

    batch:  (B, T, D)
    weight: (C, D)    (PyTorch nn.Linear.weight layout)
    bias:   (C,)
    returns (B, T, C) in batch.dtype
    """
    B, T, D = batch.shape
    C = weight.shape[0]
    out_dtype = batch.dtype
    M = B * T

    # Sublane packing for the compute dtype (f32: 8 rows/vreg, bf16: 16).
    pack = (8 * 4) // jnp.dtype(compute_dtype).itemsize
    # Effective row tile: large enough to amortize per-step pipeline overhead,
    # but never larger than the (padded) problem itself.
    tm = min(_round_up(tile_m, pack), _round_up(M, pack))
    M_pad = _round_up(M, tm)
    grid_m = M_pad // tm

    # Flatten, cast to compute dtype, zero-pad rows up to a tile multiple.
    x2d = batch.reshape(M, D).astype(compute_dtype)
    if M_pad != M:
        x2d = jnp.pad(x2d, ((0, M_pad - M), (0, 0)))
    w_t = weight.T.astype(compute_dtype)            # (D, C)
    b2d = bias.astype(jnp.float32).reshape(1, C)    # (1, C), added in f32

    out2d = pl.pallas_call(
        _linear_kernel,
        out_shape=jax.ShapeDtypeStruct((M_pad, C), out_dtype),
        grid_spec=pltpu.PrefetchScalarGridSpec(
            num_scalar_prefetch=0,
            grid=(grid_m,),
            in_specs=[
                pl.BlockSpec((tm, D), lambda i: (i, 0)),  # x row tile
                pl.BlockSpec((D, C), lambda i: (0, 0)),   # full weight (resident)
                pl.BlockSpec((1, C), lambda i: (0, 0)),   # bias row (resident)
            ],
            out_specs=pl.BlockSpec((tm, C), lambda i: (i, 0)),
        ),
        compiler_params=pltpu.CompilerParams(
            dimension_semantics=("parallel",),
        ),
    )(x2d, w_t, b2d)

    if M_pad != M:
        out2d = out2d[:M]
    return out2d.reshape(B, T, C)


def decode(characters, predictions):
    """Pure-Python CTC greedy decode (host-side; no Pallas equivalent needed)."""
    chars = ['[CTCblank]'] + list(characters)
    text = [chars[int(i)] for i in predictions]
    out = []
    for i in range(len(text)):
        if text[i] != '[CTCblank]' and not (i > 0 and text[i - 1] == text[i]):
            out.append(text[i])
    return ''.join(out)


def _reference(batch, weight, bias, compute_dtype):
    # Matches the kernel's numerics: compute-dtype operands, f32 accumulation,
    # f32 bias add.
    acc = jnp.einsum(
        "btd,cd->btc",
        batch.astype(compute_dtype),
        weight.astype(compute_dtype),
        preferred_element_type=jnp.float32,
    )
    return (acc + bias.astype(jnp.float32)).astype(batch.dtype)


if __name__ == "__main__":
    # Small, deterministic setup consistent with the module:
    #   input_size = 32, characters = "0123456789" -> num_classes = 11
    characters = list("0123456789")
    input_size = 32
    num_classes = 1 + len(characters)

    key = jax.random.PRNGKey(0)
    kx, kw, kb, kx2 = jax.random.split(key, 4)

    # Deterministic synthetic nn.Linear parameters (PyTorch shapes: (C, D), (C,))
    weight = jax.random.normal(kw, (num_classes, input_size), dtype=jnp.float32) * 0.1
    bias = jax.random.normal(kb, (num_classes,), dtype=jnp.float32) * 0.1

    # --- case 1: tiny batch (B*T smaller than the default tile) ---
    B, T = 2, 8
    batch = jax.random.normal(kx, (B, T, input_size), dtype=jnp.float32)
    logits = jax.block_until_ready(ctc_forward(batch, weight, bias))
    assert logits.shape == (B, T, num_classes)
    ref = _reference(batch, weight, bias, jnp.bfloat16)
    assert jnp.allclose(logits, ref, atol=1e-4, rtol=1e-4)
    # Loose sanity check against the pure-f32 math (bf16 rounding only).
    ref_f32 = jnp.einsum("btd,cd->btc", batch, weight) + bias
    assert jnp.allclose(logits, ref_f32, atol=5e-2, rtol=5e-2)

    # --- case 2: non-divisible B*T, multi-step grid (exercises padding path) ---
    B2, T2 = 3, 50  # M = 150, not a multiple of the tile
    batch2 = jax.random.normal(kx2, (B2, T2, input_size), dtype=jnp.float32)
    logits2 = jax.block_until_ready(ctc_forward(batch2, weight, bias, tile_m=64))
    assert logits2.shape == (B2, T2, num_classes)
    ref2 = _reference(batch2, weight, bias, jnp.bfloat16)
    assert jnp.allclose(logits2, ref2, atol=1e-4, rtol=1e-4)

    # Exercise the (host-side) greedy decode path too.
    preds = jnp.argmax(logits[0], axis=-1)
    _ = decode(characters, jax.device_get(preds).tolist())

    print("KERNEL_OK")
</pallas_src>

<mosaic_0001>
module attributes {stable_mosaic.version = 11 : i64} {
  func.func @_linear_kernel(%arg0: i32, %arg1: memref<16x32xbf16, #tpu.memory_space<vmem>>, %arg2: memref<32x11xbf16, #tpu.memory_space<vmem>>, %arg3: memref<1x11xf32, #tpu.memory_space<vmem>>, %arg4: memref<16x11xf32, #tpu.memory_space<vmem>>) attributes {dimension_semantics = [#tpu.dimension_semantics<parallel>], iteration_bounds = array<i64: 1>, scalar_prefetch = 0 : i64, scratch_operands = 0 : i64, tpu.core_type = #tpu.core_type<tc>, window_params = [{transform_indices = @transform_0, window_bounds = array<i64: 16, 32>}, {pipeline_mode = #tpu.pipeline_mode<synchronous>, transform_indices = @transform_1, window_bounds = array<i64: 32, 11>}, {pipeline_mode = #tpu.pipeline_mode<synchronous>, transform_indices = @transform_2, window_bounds = array<i64: 1, 11>}, {transform_indices = @transform_3, window_bounds = array<i64: 16, 11>}]} {
    %c0 = arith.constant 0 : index
    %c0_0 = arith.constant 0 : index
    %0 = vector.load %arg1[%c0, %c0_0] : memref<16x32xbf16, #tpu.memory_space<vmem>>, vector<16x32xbf16>
    %c0_1 = arith.constant 0 : index
    %c0_2 = arith.constant 0 : index
    %1 = vector.load %arg2[%c0_1, %c0_2] : memref<32x11xbf16, #tpu.memory_space<vmem>>, vector<32x11xbf16>
    %cst = arith.constant dense<0.000000e+00> : vector<16x11xf32>
    %2 = tpu.matmul %0, %1, %cst {dimension_numbers = #tpu.dot_dimension_numbers<[1], [0], [0], [1], [0, 0, 1, 1], [], []>} : vector<16x32xbf16>, vector<32x11xbf16>, vector<16x11xf32> -> vector<16x11xf32>
    %c0_3 = arith.constant 0 : index
    %c0_4 = arith.constant 0 : index
    %3 = vector.load %arg3[%c0_3, %c0_4] : memref<1x11xf32, #tpu.memory_space<vmem>>, vector<1x11xf32>
    %4 = vector.broadcast %3 : vector<1x11xf32> to vector<16x11xf32>
    %5 = arith.addf %2, %4 : vector<16x11xf32>
    %c0_5 = arith.constant 0 : index
    %c0_6 = arith.constant 0 : index
    %6 = vector.load %arg4[%c0_5, %c0_6] : memref<16x11xf32, #tpu.memory_space<vmem>>, vector<16x11xf32>
    tpu.vector_store %arg4[%c0_5, %c0_6], %5 {strides = array<i32>} : memref<16x11xf32, #tpu.memory_space<vmem>>, vector<16x11xf32>,
    return
  }
  func.func @transform_0(%arg0: i32) -> (i32, i32) {
    %c0_i32 = arith.constant 0 : i32
    %c0_i32_0 = arith.constant 0 : i32
    return %arg0, %c0_i32 : i32, i32
  }
  func.func @transform_1(%arg0: i32) -> (i32, i32) {
    %c0_i32 = arith.constant 0 : i32
    %c0_i32_0 = arith.constant 0 : i32
    %c0_i32_1 = arith.constant 0 : i32
    return %c0_i32, %c0_i32_0 : i32, i32
  }
  func.func @transform_2(%arg0: i32) -> (i32, i32) {
    %c0_i32 = arith.constant 0 : i32
    %c0_i32_0 = arith.constant 0 : i32
    %c0_i32_1 = arith.constant 0 : i32
    return %c0_i32, %c0_i32_0 : i32, i32
  }
  func.func @transform_3(%arg0: i32) -> (i32, i32) {
    %c0_i32 = arith.constant 0 : i32
    %c0_i32_0 = arith.constant 0 : i32
    return %arg0, %c0_i32 : i32, i32
  }
}

</mosaic_0001>

<llo_original>
// kernel: tpu_custom_call.1
$region0: #{tpu_custom_call.1}
  #allocation0 [shape = 'u32[]', space=smem, size = 0x4, offset = 0x4, fixed_abs, tag = 'smem constant byte address 0x4 - core index']
  #allocation1 [shape = 'u32[144,128]{1,0:T(1,128)}', space=vmem, size = 0x12000, scoped, tag = 'internal scratch']
  %s0 = inlined_call_operand.vmem [shape: bf16[16,32], index: 0, kind: input, shape index: {}]
  %s1 = inlined_call_operand.vmem [shape: bf16[32,11], index: 1, kind: input, shape index: {}]
  %s2 = inlined_call_operand.vmem [shape: f32[1,11], index: 2, kind: input, shape index: {}]
  %s3 = inlined_call_operand.hbm [shape: f32[16,11], index: 3, kind: output, shape index: {}]
  %s4 = sld [smem:[#allocation0]]
  $region22: #{tpu_custom_call.1} parent=0
    _
  %s6 = ssub.s32 1, %s4
  %s7 = scalar_select 0, %s6, %s4
  $region1: #{tpu_custom_call.1} parent=0
    #allocation2 [shape = 'u8[8192]{0}', space=vmem, size = 0x2000, scoped, tag = 'output window, operand 0, single buffered']
    #allocation3 [shape = 's32[1]{0}', space=sflag, size = 0x4, scoped, tag = 'scoped memory for tpu_custom_call.1']
    %8 = vsyncpa [#allocation3], 0
    // Predicated region
    $region2: #{tpu_custom_call.1} parent=1 // pred_check
      _
    $region3: #{tpu_custom_call.1} parent=1 // pred_check_branch
      %10 = sbr.rel (0) target = $region5
    $region4: #{tpu_custom_call.1} parent=1 // pred_region
      _
    $region5: #{tpu_custom_call.1} parent=1 // pred_fallthru
      _
    // Predicated region
    $region6: #{tpu_custom_call.1} parent=1 // pred_check
      _
    $region7: #{tpu_custom_call.1} parent=1 // pred_check_branch
      %12 = sbr.rel (0) target = $region9
    $region8: #{tpu_custom_call.1} parent=1 // pred_region
      _
    $region9: #{tpu_custom_call.1} parent=1 // pred_fallthru
      _
    // Predicated region
    $region10: #{tpu_custom_call.1} parent=1 // pred_check
      _
    $region11: #{tpu_custom_call.1} parent=1 // pred_check_branch
      %14 = sbr.rel (0) target = $region13
    $region12: #{tpu_custom_call.1} parent=1 // pred_region
      _
    $region13: #{tpu_custom_call.1} parent=1 // pred_fallthru
      _
    %v16 = vld [vmem:[%s0] sm:$0xf]
    %v17 = vld [vmem:[%s0 + $0x4] sm:$0xf]
    %v18 = vld [vmem:[%s1] sm:$0xf]
    %v19 = vld [vmem:[%s1 + $0x4] sm:$0xf]
    %v20 = vld [vmem:[%s1 + $0x8] sm:$0xf]
    %v21 = vld [vmem:[%s1 + $0xc] sm:$0xf]
    %v22 = vld [vmem:[%s2] sm:$0x1]
    %v24 = vlaneseq
    %v25 = vshrl.u32 %v24, 7
    %v26 = vsub.s32 0, %v25
    %v27 = vrot.slane %v22, %v26
    %v31 = vunpack.c.l.b16 %v16
    %v32 = vunpack.c.l.b16 %v17
    %v33 = vpack.c.b16 %v32, %v31
    %v38 = vunpack.c.l.b16 %v18
    %v39 = vunpack.c.l.b16 %v19
    %v40 = vunpack.c.l.b16 %v20
    %v41 = vunpack.c.l.b16 %v21
    %v42 = vpack.c.b16 %v39, %v38
    %v43 = vpack.c.b16 %v41, %v40
    %vm46 = vcmask 261120
    %v48 = vsel %vm46, %v33, 0
    %50 = vmatprep.subr.bf16.mxu0 0
    %51 = vmatpush1.bf16.msra.mxu0 0
    %52 = vmatprep.subr.bf16.mxu0 0
    %53 = vmatpush1.bf16.msra.mxu0 0
    %54 = vmatprep.subr.bf16.mxu0 0
    %55 = vmatpush1.bf16.msra.mxu0 0
    %56 = vmatprep.subr.bf16.mxu0 0
    %57 = vmatpush1.bf16.msra.mxu0 0
    %58 = vmatprep.subr.bf16.mxu0 0
    %59 = vmatpush1.bf16.msra.mxu0 0
    %60 = vmatprep.subr.bf16.mxu0 0
    %61 = vmatpush1.bf16.msra.mxu0 0
    %62 = vmatprep.subr.bf16.mxu0 0
    %63 = vmatpush1.bf16.msra.mxu0 %v43
    %64 = vmatprep.subr.bf16.mxu0 0
    %65 = vmatpush1.bf16.msra.mxu0 %v42
    %66 = vmatprep.subr.bf16.mxu0 0
    %67 = vmatpush2.bf16.msra.mxu0 0
    %68 = vmatprep.subr.bf16.mxu0 0
    %69 = vmatpush2.bf16.msra.mxu0 0
    %70 = vmatprep.subr.bf16.mxu0 0
    %71 = vmatpush2.bf16.msra.mxu0 0
    %72 = vmatprep.subr.bf16.mxu0 0
    %73 = vmatpush2.bf16.msra.mxu0 0
    %74 = vmatprep.subr.bf16.mxu0 0
    %75 = vmatpush2.bf16.msra.mxu0 0
    %76 = vmatprep.subr.bf16.mxu0 0
    %77 = vmatpush2.bf16.msra.mxu0 0
    %78 = vmatprep.subr.bf16.mxu0 0
    %79 = vmatpush2.bf16.msra.mxu0 0
    %80 = vmatprep.subr.bf16.mxu0 0
    %81 = vmatpush2.bf16.msra.mxu0 0
    %82 = vmatprep.mubr.bf16.mxu0 0
    %83 = vmatmul.mubr.bf16.gmra.mxu0 %v48
    %v84 = vpop.f32.mrf.mxu0
    %v85 = vadd.f32 %v27, %v84
    %v86 = vpop.f32.mrf.mxu0
    %v87 = vpop.f32.mrf.mxu0
    %v88 = vadd.f32 %v27, %v87
    %v89 = vpop.f32.mrf.mxu0
    %90 = vdwg.mxu0
    %vm91 = vcmask 89088
    %92 = vst.msk [vmem:[#allocation2] sm:$0xff] %vm91, %v85
    %93 = vst.msk [vmem:[#allocation2 + $0x8] sm:$0xff] %vm91, %v88
    // Predicated region
    $region14: #{tpu_custom_call.1} parent=1 // pred_check
      _
    $region15: #{tpu_custom_call.1} parent=1 // pred_check_branch
      %95 = sbr.rel (0) target = $region17
    $region16: #{tpu_custom_call.1} parent=1 // pred_region
      %s97 = ssub.s32 256, 256
      %98 = vsyncadd [#allocation3], %s97
      %s99 = sshll.u32 [#allocation2], 4
      %s100 = int_to_ptr.vmem [resolvable:$true] %s99
      %105 = dma.vmem_to_hbm [thread:$0]  %s100, 256, %s3, [#allocation3], 128, 128, 8
    $region17: #{tpu_custom_call.1} parent=1 // pred_fallthru
      _
    // Predicated region
    $region18: #{tpu_custom_call.1} parent=1 // pred_check
      _
    $region19: #{tpu_custom_call.1} parent=1 // pred_check_branch
      %107 = sbr.rel (0) target = $region21
    $region20: #{tpu_custom_call.1} parent=1 // pred_region
      %108 = dma.done [#allocation3], 256
    $region21: #{tpu_custom_call.1} parent=1 // pred_fallthru
      _
    %109 = vsyncpa [#allocation3], 1

</llo_original>
